<compile_context>
chip_gen: v7x
topology: tpu7x:2x2x1
jax: 0.10.0
libtpu: 0.0.40
codegen_flags: <defaults>
</compile_context>

<pallas_src>
import jax
import jax.numpy as jnp
import numpy as np
from jax.experimental import pallas as pl
from jax.experimental.pallas import tpu as pltpu


def _round_up(v, m):
    return (v + m - 1) // m * m


def _make_indexed_maxpool_kernel(K, L_in, chunk):
    """Builds kernel(idx_ref, x_ref, out_ref) with K and the L_in chunking unrolled."""

    def kernel(idx_ref, x_ref, out_ref):
        # idx_ref : (K, 1, tn) int32, -1 = missing neighbour
        # x_ref   : (tm, L_in) compute dtype (resident across the j axis)
        # out_ref : (tm, tn)  compute dtype
        tn = out_ref.shape[1]
        x_dtype = x_ref.dtype

        result = None
        for k in range(K):                        # K is small (4..7): fully unrolled
            idx_row = idx_ref[k]                  # (1, tn)
            acc = None
            for base in range(0, L_in, chunk):    # bounded one-hot slabs
                size = min(chunk, L_in - base)
                iota = jax.lax.broadcasted_iota(jnp.int32, (size, tn), 0) + base
                # idx == -1 (or out of range) matches no row -> all-zero column,
                # which reproduces the zero-padding mask of the PyTorch forward.
                onehot = (iota == idx_row).astype(x_dtype)
                part = jnp.dot(x_ref[:, base:base + size], onehot,
                               preferred_element_type=jnp.float32)
                acc = part if acc is None else acc + part
            result = acc if k == 0 else jnp.maximum(result, acc)
        out_ref[...] = result.astype(out_ref.dtype)

    return kernel


def indexed_max_pool2d(x, indices):
    """x: (N, C, L_in).  indices: (K, L_out) int32 with -1 = missing neighbour."""
    N, C, L_in = x.shape
    K, L_out = indices.shape
    in_dtype = x.dtype

    # Stream x in its native dtype when the MXU handles it natively; the
    # one-hot gather is exact for bf16/f16 because each output element is a
    # single selected input value and accumulation is f32.
    if jnp.dtype(in_dtype) in (jnp.dtype(jnp.float32), jnp.dtype(jnp.bfloat16),
                               jnp.dtype(jnp.float16)):
        compute_dtype = jnp.dtype(in_dtype)
    else:
        compute_dtype = jnp.dtype(jnp.float32)
    itemsize = compute_dtype.itemsize
    sub = 8 if itemsize >= 4 else (16 if itemsize == 2 else 32)

    M = N * C

    # M tile: prefer a divisor of M so no host-side pad pass over x is needed.
    if M <= 256:
        tm = _round_up(M, sub)
    else:
        tm = 256
        for cand in (256, 128, 64, 32, 16, 8):
            if cand % sub == 0 and M % cand == 0:
                tm = cand
                break
    # Lane-dense output tiles.
    tn = min(256, _round_up(L_out, 128))

    # v7x has 2 TensorCores sharded over the "parallel" axes: expose >=2 tiles
    # when the problem is big enough to split.
    if pl.cdiv(M, tm) * pl.cdiv(L_out, tn) < 2:
        if L_out > 128:
            tn = 128
        elif M >= 2 * sub and (M // 2) % sub == 0:
            tm = M // 2

    M_pad = _round_up(M, tm)
    L_out_pad = _round_up(L_out, tn)

    # Index table is tiny: pad its columns with -1 (masked) so padded output
    # columns come out 0 and are sliced off below.
    idx = jnp.asarray(indices, jnp.int32)
    if L_out_pad != L_out:
        idx = jnp.pad(idx, ((0, 0), (0, L_out_pad - L_out)), constant_values=-1)
    idx3 = idx.reshape(K, 1, L_out_pad)

    x2 = x.reshape(M, L_in)
    if jnp.dtype(in_dtype) != compute_dtype:
        x2 = x2.astype(compute_dtype)
    if M_pad != M:
        x2 = jnp.pad(x2, ((0, M_pad - M), (0, 0)))

    # TODO(synk): for very large L_in, window the contraction per output tile
    # (scalar-prefetched per-tile base offsets) to cut MXU work by ~L_in/W.
    chunk = min(512, L_in)
    kernel = _make_indexed_maxpool_kernel(K, L_in, chunk)

    grid = (M_pad // tm, L_out_pad // tn)

    # VMEM budget: double-buffered x/out tiles + idx block + bounded one-hot
    # slab + f32 accumulators.  Capped at 48 MiB for v7x's 64 MiB/TC VMEM.
    est = (2 * tm * L_in * itemsize
           + 2 * K * tn * 4
           + 2 * tm * tn * itemsize
           + chunk * tn * itemsize
           + 2 * tm * tn * 4)
    vmem_limit = int(min(48 << 20, max(32 << 20, 2 * est)))

    out2 = pl.pallas_call(
        kernel,
        out_shape=jax.ShapeDtypeStruct((M_pad, L_out_pad), compute_dtype),
        grid_spec=pltpu.PrefetchScalarGridSpec(
            num_scalar_prefetch=0,
            grid=grid,
            in_specs=[
                pl.BlockSpec((K, 1, tn), lambda i, j: (0, 0, j)),   # all k rows per j tile
                pl.BlockSpec((tm, L_in), lambda i, j: (i, 0)),      # x tile, resident over j
            ],
            out_specs=pl.BlockSpec((tm, tn), lambda i, j: (i, j)),
        ),
        compiler_params=pltpu.CompilerParams(
            dimension_semantics=("parallel", "parallel"),
            vmem_limit_bytes=vmem_limit),
    )(idx3, x2)

    out = out2
    if M_pad != M or L_out_pad != L_out:
        out = out[:M, :L_out]
    out = out.reshape(N, C, L_out)
    if out.dtype != jnp.dtype(in_dtype):
        out = out.astype(in_dtype)
    return out


if __name__ == "__main__":
    key = jax.random.PRNGKey(0)
    N, C, H, W = 2, 4, 16, 16
    L_in = H * W
    x = jax.random.normal(key, (N, C, H, W), dtype=jnp.float32)

    # 2x2 / stride-2 pooling neighbour matrix over the 16x16 grid -> 8x8 out.
    Ho, Wo = H // 2, W // 2
    idx_rows = []
    for di in range(2):
        for dj in range(2):
            row = [(2 * i + di) * W + (2 * j + dj)
                   for i in range(Ho) for j in range(Wo)]
            idx_rows.append(row)
    indices_np = np.array(idx_rows, dtype=np.int32)   # (K=4, L_out=64)
    indices_np[3, ::7] = -1                           # exercise the -1 / mask path
    indices = jnp.asarray(indices_np)

    x_flat = x.reshape(N, C, L_in)
    out = indexed_max_pool2d(x_flat, indices)
    out = jax.block_until_ready(out)

    # Pure-JAX reference matching the PyTorch forward exactly.
    mask = (indices != -1).astype(jnp.float32)
    safe_idx = jnp.where(indices == -1, 0, indices)
    col = x_flat[..., safe_idx] * mask                # (N, C, K, L_out)
    ref = jnp.max(col, axis=2)

    assert out.shape == (N, C, Ho * Wo)
    np.testing.assert_allclose(np.asarray(out), np.asarray(ref), rtol=1e-5, atol=1e-5)
    print("KERNEL_OK")
</pallas_src>

<mosaic_0001>
module attributes {stable_mosaic.version = 11 : i64} {
  func.func @kernel(%arg0: i32, %arg1: i32, %arg2: memref<4x1x128xi32, #tpu.memory_space<vmem>>, %arg3: memref<8x256xf32, #tpu.memory_space<vmem>>, %arg4: memref<8x128xf32, #tpu.memory_space<vmem>>) attributes {dimension_semantics = [#tpu.dimension_semantics<parallel>, #tpu.dimension_semantics<parallel>], iteration_bounds = array<i64: 1, 1>, scalar_prefetch = 0 : i64, scratch_operands = 0 : i64, tpu.core_type = #tpu.core_type<tc>, window_params = [{transform_indices = @transform_0, window_bounds = array<i64: 4, 1, 128>}, {transform_indices = @transform_1, window_bounds = array<i64: 8, 256>}, {transform_indices = @transform_2, window_bounds = array<i64: 8, 128>}]} {
    %c0 = arith.constant 0 : index
    %c0_0 = arith.constant 0 : index
    %c0_1 = arith.constant 0 : index
    %0 = vector.load %arg2[%c0, %c0_0, %c0_1] : memref<4x1x128xi32, #tpu.memory_space<vmem>>, vector<1x1x128xi32>
    %1 = vector.shape_cast %0 : vector<1x1x128xi32> to vector<1x128xi32>
    %2 = tpu.iota {dimensions = array<i32: 0>} : vector<256x128xi32>
    %c0_i32 = arith.constant 0 : i32
    %3 = vector.broadcast %c0_i32 : i32 to vector<256x128xi32>
    %4 = arith.addi %2, %3 : vector<256x128xi32>
    %5 = vector.broadcast %1 : vector<1x128xi32> to vector<256x128xi32>
    %6 = arith.cmpi eq, %4, %5 : vector<256x128xi32>
    %7 = arith.extui %6 : vector<256x128xi1> to vector<256x128xi32>
    %8 = arith.sitofp %7 : vector<256x128xi32> to vector<256x128xf32>
    %c0_2 = arith.constant 0 : index
    %c0_3 = arith.constant 0 : index
    %9 = vector.load %arg3[%c0_2, %c0_3] : memref<8x256xf32, #tpu.memory_space<vmem>>, vector<8x256xf32>
    %cst = arith.constant dense<0.000000e+00> : vector<8x128xf32>
    %10 = tpu.matmul %9, %8, %cst {dimension_numbers = #tpu.dot_dimension_numbers<[1], [0], [0], [1], [0, 0, 1, 1], [], []>} : vector<8x256xf32>, vector<256x128xf32>, vector<8x128xf32> -> vector<8x128xf32>
    %c1 = arith.constant 1 : index
    %c0_4 = arith.constant 0 : index
    %c0_5 = arith.constant 0 : index
    %11 = vector.load %arg2[%c1, %c0_4, %c0_5] : memref<4x1x128xi32, #tpu.memory_space<vmem>>, vector<1x1x128xi32>
    %12 = vector.shape_cast %11 : vector<1x1x128xi32> to vector<1x128xi32>
    %13 = tpu.iota {dimensions = array<i32: 0>} : vector<256x128xi32>
    %c0_i32_6 = arith.constant 0 : i32
    %14 = vector.broadcast %c0_i32_6 : i32 to vector<256x128xi32>
    %15 = arith.addi %13, %14 : vector<256x128xi32>
    %16 = vector.broadcast %12 : vector<1x128xi32> to vector<256x128xi32>
    %17 = arith.cmpi eq, %15, %16 : vector<256x128xi32>
    %18 = arith.extui %17 : vector<256x128xi1> to vector<256x128xi32>
    %19 = arith.sitofp %18 : vector<256x128xi32> to vector<256x128xf32>
    %c0_7 = arith.constant 0 : index
    %c0_8 = arith.constant 0 : index
    %20 = vector.load %arg3[%c0_7, %c0_8] : memref<8x256xf32, #tpu.memory_space<vmem>>, vector<8x256xf32>
    %cst_9 = arith.constant dense<0.000000e+00> : vector<8x128xf32>
    %21 = tpu.matmul %20, %19, %cst_9 {dimension_numbers = #tpu.dot_dimension_numbers<[1], [0], [0], [1], [0, 0, 1, 1], [], []>} : vector<8x256xf32>, vector<256x128xf32>, vector<8x128xf32> -> vector<8x128xf32>
    %22 = arith.maximumf %10, %21 : vector<8x128xf32>
    %c2 = arith.constant 2 : index
    %c0_10 = arith.constant 0 : index
    %c0_11 = arith.constant 0 : index
    %23 = vector.load %arg2[%c2, %c0_10, %c0_11] : memref<4x1x128xi32, #tpu.memory_space<vmem>>, vector<1x1x128xi32>
    %24 = vector.shape_cast %23 : vector<1x1x128xi32> to vector<1x128xi32>
    %25 = tpu.iota {dimensions = array<i32: 0>} : vector<256x128xi32>
    %c0_i32_12 = arith.constant 0 : i32
    %26 = vector.broadcast %c0_i32_12 : i32 to vector<256x128xi32>
    %27 = arith.addi %25, %26 : vector<256x128xi32>
    %28 = vector.broadcast %24 : vector<1x128xi32> to vector<256x128xi32>
    %29 = arith.cmpi eq, %27, %28 : vector<256x128xi32>
    %30 = arith.extui %29 : vector<256x128xi1> to vector<256x128xi32>
    %31 = arith.sitofp %30 : vector<256x128xi32> to vector<256x128xf32>
    %c0_13 = arith.constant 0 : index
    %c0_14 = arith.constant 0 : index
    %32 = vector.load %arg3[%c0_13, %c0_14] : memref<8x256xf32, #tpu.memory_space<vmem>>, vector<8x256xf32>
    %cst_15 = arith.constant dense<0.000000e+00> : vector<8x128xf32>
    %33 = tpu.matmul %32, %31, %cst_15 {dimension_numbers = #tpu.dot_dimension_numbers<[1], [0], [0], [1], [0, 0, 1, 1], [], []>} : vector<8x256xf32>, vector<256x128xf32>, vector<8x128xf32> -> vector<8x128xf32>
    %34 = arith.maximumf %22, %33 : vector<8x128xf32>
    %c3 = arith.constant 3 : index
    %c0_16 = arith.constant 0 : index
    %c0_17 = arith.constant 0 : index
    %35 = vector.load %arg2[%c3, %c0_16, %c0_17] : memref<4x1x128xi32, #tpu.memory_space<vmem>>, vector<1x1x128xi32>
    %36 = vector.shape_cast %35 : vector<1x1x128xi32> to vector<1x128xi32>
    %37 = tpu.iota {dimensions = array<i32: 0>} : vector<256x128xi32>
    %c0_i32_18 = arith.constant 0 : i32
    %38 = vector.broadcast %c0_i32_18 : i32 to vector<256x128xi32>
    %39 = arith.addi %37, %38 : vector<256x128xi32>
    %40 = vector.broadcast %36 : vector<1x128xi32> to vector<256x128xi32>
    %41 = arith.cmpi eq, %39, %40 : vector<256x128xi32>
    %42 = arith.extui %41 : vector<256x128xi1> to vector<256x128xi32>
    %43 = arith.sitofp %42 : vector<256x128xi32> to vector<256x128xf32>
    %c0_19 = arith.constant 0 : index
    %c0_20 = arith.constant 0 : index
    %44 = vector.load %arg3[%c0_19, %c0_20] : memref<8x256xf32, #tpu.memory_space<vmem>>, vector<8x256xf32>
    %cst_21 = arith.constant dense<0.000000e+00> : vector<8x128xf32>
    %45 = tpu.matmul %44, %43, %cst_21 {dimension_numbers = #tpu.dot_dimension_numbers<[1], [0], [0], [1], [0, 0, 1, 1], [], []>} : vector<8x256xf32>, vector<256x128xf32>, vector<8x128xf32> -> vector<8x128xf32>
    %46 = arith.maximumf %34, %45 : vector<8x128xf32>
    %c0_22 = arith.constant 0 : index
    %c0_23 = arith.constant 0 : index
    %47 = vector.load %arg4[%c0_22, %c0_23] : memref<8x128xf32, #tpu.memory_space<vmem>>, vector<8x128xf32>
    tpu.vector_store %arg4[%c0_22, %c0_23], %46 {strides = array<i32>} : memref<8x128xf32, #tpu.memory_space<vmem>>, vector<8x128xf32>,
    return
  }
  func.func @transform_0(%arg0: i32, %arg1: i32) -> (i32, i32, i32) {
    %c0_i32 = arith.constant 0 : i32
    %c0_i32_0 = arith.constant 0 : i32
    %c0_i32_1 = arith.constant 0 : i32
    return %c0_i32, %c0_i32_0, %arg1 : i32, i32, i32
  }
  func.func @transform_1(%arg0: i32, %arg1: i32) -> (i32, i32) {
    %c0_i32 = arith.constant 0 : i32
    %c0_i32_0 = arith.constant 0 : i32
    return %arg0, %c0_i32 : i32, i32
  }
  func.func @transform_2(%arg0: i32, %arg1: i32) -> (i32, i32) {
    %c0_i32 = arith.constant 0 : i32
    return %arg0, %arg1 : i32, i32
  }
}

</mosaic_0001>

<llo_original>
// kernel: tpu_custom_call.1
$region0: #{tpu_custom_call.1}
  #allocation0 [shape = 'u32[]', space=smem, size = 0x4, offset = 0x4, fixed_abs, tag = 'smem constant byte address 0x4 - core index']
  #allocation1 [shape = 'u32[144,128]{1,0:T(1,128)}', space=vmem, size = 0x12000, scoped, tag = 'internal scratch']
  %s0 = inlined_call_operand.hbm [shape: s32[4,1,128], index: 0, kind: input, shape index: {}]
  %s1 = inlined_call_operand.hbm [shape: f32[8,256], index: 1, kind: input, shape index: {}]
  %s2 = inlined_call_operand.hbm [shape: f32[8,128], index: 2, kind: output, shape index: {}]
  %s3 = sld [smem:[#allocation0]]
  $region26: #{tpu_custom_call.1} parent=0
    _
  %s5 = ssub.s32 1, %s3
  %s6 = scalar_select 0, %s5, %s3
  $region1: #{tpu_custom_call.1} parent=0
    #allocation2 [shape = 'u8[2048]{0}', space=vmem, size = 0x800, scoped, tag = 'input window, operand 0, single buffered']
    #allocation3 [shape = 's32[1]{0}', space=sflag, size = 0x4, scoped, tag = 'scoped memory for tpu_custom_call.1']
    #allocation4 [shape = 's32[1]{0}', space=sflag, size = 0x4, scoped, tag = 'scoped memory for tpu_custom_call.1']
    #allocation5 [shape = 'u8[8192]{0}', space=vmem, size = 0x2000, scoped, tag = 'input window, operand 1, single buffered']
    #allocation6 [shape = 's32[1]{0}', space=sflag, size = 0x4, scoped, tag = 'scoped memory for tpu_custom_call.1']
    #allocation7 [shape = 'u8[4096]{0}', space=vmem, size = 0x1000, scoped, tag = 'output window, operand 0, single buffered']
    %7 = vsyncpa [#allocation3], 0
    %8 = vsyncpa [#allocation6], 0
    %9 = vsyncpa [#allocation4], 0
    // Predicated region
    $region2: #{tpu_custom_call.1} parent=1 // pred_check
      _
    $region3: #{tpu_custom_call.1} parent=1 // pred_check_branch
      %11 = sbr.rel (0) target = $region5
    $region4: #{tpu_custom_call.1} parent=1 // pred_region
      %s13 = ssub.s32 64, 64
      %14 = vsyncadd [#allocation3], %s13
      %s15 = sshll.u32 [#allocation2], 4
      %s16 = int_to_ptr.vmem [resolvable:$true] %s15
      %21 = dma.hbm_to_vmem [thread:$0]  %s0, 64, %s16, [#allocation3], 16, 16, 1
    $region5: #{tpu_custom_call.1} parent=1 // pred_fallthru
      _
    // Predicated region
    $region6: #{tpu_custom_call.1} parent=1 // pred_check
      _
    $region7: #{tpu_custom_call.1} parent=1 // pred_check_branch
      %23 = sbr.rel (0) target = $region9
    $region8: #{tpu_custom_call.1} parent=1 // pred_region
      %s25 = ssub.s32 256, 256
      %26 = vsyncadd [#allocation6], %s25
      %s28 = sshll.u32 [#allocation5], 4
      %s29 = int_to_ptr.vmem [resolvable:$true] %s28
      %31 = dma.hbm_to_vmem [thread:$0]  %s1, 256, %s29, [#allocation6]
    $region9: #{tpu_custom_call.1} parent=1 // pred_fallthru
      _
    // Predicated region
    $region10: #{tpu_custom_call.1} parent=1 // pred_check
      _
    $region11: #{tpu_custom_call.1} parent=1 // pred_check_branch
      %33 = sbr.rel (0) target = $region13
    $region12: #{tpu_custom_call.1} parent=1 // pred_region
      %34 = dma.done [#allocation3], 64
    $region13: #{tpu_custom_call.1} parent=1 // pred_fallthru
      _
    // Predicated region
    $region14: #{tpu_custom_call.1} parent=1 // pred_check
      _
    $region15: #{tpu_custom_call.1} parent=1 // pred_check_branch
      %36 = sbr.rel (0) target = $region17
    $region16: #{tpu_custom_call.1} parent=1 // pred_region
      %37 = dma.done [#allocation6], 256
    $region17: #{tpu_custom_call.1} parent=1 // pred_fallthru
      _
    %v38 = vld [vmem:[#allocation2] sm:$0x1]
    %v39 = vlaneseq
    %v40 = vshrl.u32 %v39, 7
    %v41 = vadd.s32 %v40, 8
    %v42 = vadd.s32 %v40, 16
    %v43 = vadd.s32 %v40, 24
    %v44 = vadd.s32 %v40, 32
    %v45 = vadd.s32 %v40, 40
    %v46 = vadd.s32 %v40, 48
    %v47 = vadd.s32 %v40, 56
    %v48 = vadd.s32 %v40, 64
    %v49 = vadd.s32 %v40, 72
    %v50 = vadd.s32 %v40, 80
    %v51 = vadd.s32 %v40, 88
    %v52 = vadd.s32 %v40, 96
    %v53 = vadd.s32 %v40, 104
    %v54 = vadd.s32 %v40, 112
    %v55 = vadd.s32 %v40, 120
    %v56 = vadd.s32 %v40, 128
    %v57 = vadd.s32 %v40, 136
    %v58 = vadd.s32 %v40, 144
    %v59 = vadd.s32 %v40, 152
    %v60 = vadd.s32 %v40, 160
    %v61 = vadd.s32 %v40, 168
    %v62 = vadd.s32 %v40, 176
    %v63 = vadd.s32 %v40, 184
    %v64 = vadd.s32 %v40, 192
    %v65 = vadd.s32 %v40, 200
    %v66 = vadd.s32 %v40, 208
    %v67 = vadd.s32 %v40, 216
    %v68 = vadd.s32 %v40, 224
    %v69 = vadd.s32 %v40, 232
    %v70 = vadd.s32 %v40, 240
    %v71 = vadd.s32 %v40, 248
    %v72 = vlaneseq
    %v73 = vshrl.u32 %v72, 7
    %v74 = vsub.s32 0, %v73
    %v75 = vrot.slane %v38, %v74
    %vm76 = vcmp.eq.s32.totalorder %v40, %v75
    %vm77 = vcmp.eq.s32.totalorder %v41, %v75
    %vm78 = vcmp.eq.s32.totalorder %v42, %v75
    %vm79 = vcmp.eq.s32.totalorder %v43, %v75
    %vm80 = vcmp.eq.s32.totalorder %v44, %v75
    %vm81 = vcmp.eq.s32.totalorder %v45, %v75
    %vm82 = vcmp.eq.s32.totalorder %v46, %v75
    %vm83 = vcmp.eq.s32.totalorder %v47, %v75
    %vm84 = vcmp.eq.s32.totalorder %v48, %v75
    %vm85 = vcmp.eq.s32.totalorder %v49, %v75
    %vm86 = vcmp.eq.s32.totalorder %v50, %v75
    %vm87 = vcmp.eq.s32.totalorder %v51, %v75
    %vm88 = vcmp.eq.s32.totalorder %v52, %v75
    %vm89 = vcmp.eq.s32.totalorder %v53, %v75
    %vm90 = vcmp.eq.s32.totalorder %v54, %v75
    %vm91 = vcmp.eq.s32.totalorder %v55, %v75
    %vm92 = vcmp.eq.s32.totalorder %v56, %v75
    %vm93 = vcmp.eq.s32.totalorder %v57, %v75
    %vm94 = vcmp.eq.s32.totalorder %v58, %v75
    %vm95 = vcmp.eq.s32.totalorder %v59, %v75
    %vm96 = vcmp.eq.s32.totalorder %v60, %v75
    %vm97 = vcmp.eq.s32.totalorder %v61, %v75
    %vm98 = vcmp.eq.s32.totalorder %v62, %v75
    %vm99 = vcmp.eq.s32.totalorder %v63, %v75
    %vm100 = vcmp.eq.s32.totalorder %v64, %v75
    %vm101 = vcmp.eq.s32.totalorder %v65, %v75
    %vm102 = vcmp.eq.s32.totalorder %v66, %v75
    %vm103 = vcmp.eq.s32.totalorder %v67, %v75
    %vm104 = vcmp.eq.s32.totalorder %v68, %v75
    %vm105 = vcmp.eq.s32.totalorder %v69, %v75
    %vm106 = vcmp.eq.s32.totalorder %v70, %v75
    %vm107 = vcmp.eq.s32.totalorder %v71, %v75
    %v108 = vsel %vm76, 1, 0
    %v109 = vsel %vm77, 1, 0
    %v110 = vsel %vm78, 1, 0
    %v111 = vsel %vm79, 1, 0
    %v112 = vsel %vm80, 1, 0
    %v113 = vsel %vm81, 1, 0
    %v114 = vsel %vm82, 1, 0
    %v115 = vsel %vm83, 1, 0
    %v116 = vsel %vm84, 1, 0
    %v117 = vsel %vm85, 1, 0
    %v118 = vsel %vm86, 1, 0
    %v119 = vsel %vm87, 1, 0
    %v120 = vsel %vm88, 1, 0
    %v121 = vsel %vm89, 1, 0
    %v122 = vsel %vm90, 1, 0
    %v123 = vsel %vm91, 1, 0
    %v124 = vsel %vm92, 1, 0
    %v125 = vsel %vm93, 1, 0
    %v126 = vsel %vm94, 1, 0
    %v127 = vsel %vm95, 1, 0
    %v128 = vsel %vm96, 1, 0
    %v129 = vsel %vm97, 1, 0
    %v130 = vsel %vm98, 1, 0
    %v131 = vsel %vm99, 1, 0
    %v132 = vsel %vm100, 1, 0
    %v133 = vsel %vm101, 1, 0
    %v134 = vsel %vm102, 1, 0
    %v135 = vsel %vm103, 1, 0
    %v136 = vsel %vm104, 1, 0
    %v137 = vsel %vm105, 1, 0
    %v138 = vsel %vm106, 1, 0
    %v139 = vsel %vm107, 1, 0
    %v140 = vcvt.s32.f32 %v108
    %v141 = vcvt.s32.f32 %v109
    %v142 = vcvt.s32.f32 %v110
    %v143 = vcvt.s32.f32 %v111
    %v144 = vcvt.s32.f32 %v112
    %v145 = vcvt.s32.f32 %v113
    %v146 = vcvt.s32.f32 %v114
    %v147 = vcvt.s32.f32 %v115
    %v148 = vcvt.s32.f32 %v116
    %v149 = vcvt.s32.f32 %v117
    %v150 = vcvt.s32.f32 %v118
    %v151 = vcvt.s32.f32 %v119
    %v152 = vcvt.s32.f32 %v120
    %v153 = vcvt.s32.f32 %v121
    %v154 = vcvt.s32.f32 %v122
    %v155 = vcvt.s32.f32 %v123
    %v156 = vcvt.s32.f32 %v124
    %v157 = vcvt.s32.f32 %v125
    %v158 = vcvt.s32.f32 %v126
    %v159 = vcvt.s32.f32 %v127
    %v160 = vcvt.s32.f32 %v128
    %v161 = vcvt.s32.f32 %v129
    %v162 = vcvt.s32.f32 %v130
    %v163 = vcvt.s32.f32 %v131
    %v164 = vcvt.s32.f32 %v132
    %v165 = vcvt.s32.f32 %v133
    %v166 = vcvt.s32.f32 %v134
    %v167 = vcvt.s32.f32 %v135
    %v168 = vcvt.s32.f32 %v136
    %v169 = vcvt.s32.f32 %v137
    %v170 = vcvt.s32.f32 %v138
    %v171 = vcvt.s32.f32 %v139
    %v172 = vld [vmem:[#allocation5] sm:$0xff]
    %v173 = vld [vmem:[#allocation5 + $0x8] sm:$0xff]
    %174 = vmatprep.subr.mxu0 0.0
    %175 = vmatpush1.msra.mxu0 %v140
    %176 = vmatprep.subr.mxu0 0.0
    %177 = vmatpush1.msra.mxu0 %v141
    %178 = vmatprep.subr.mxu0 0.0
    %179 = vmatpush1.msra.mxu0 %v142
    %180 = vmatprep.subr.mxu0 0.0
    %181 = vmatpush1.msra.mxu0 %v143
    %182 = vmatprep.subr.mxu0 0.0
    %183 = vmatpush1.msra.mxu0 %v144
    %184 = vmatprep.subr.mxu0 0.0
    %185 = vmatpush1.msra.mxu0 %v145
    %186 = vmatprep.subr.mxu0 0.0
    %187 = vmatpush1.msra.mxu0 %v146
    %188 = vmatprep.subr.mxu0 0.0
    %189 = vmatpush1.msra.mxu0 %v147
    %190 = vmatprep.subr.mxu0 0.0
    %191 = vmatpush1.msra.mxu0 %v148
    %192 = vmatprep.subr.mxu0 0.0
    %193 = vmatpush1.msra.mxu0 %v149
    %194 = vmatprep.subr.mxu0 0.0
    %195 = vmatpush1.msra.mxu0 %v150
    %196 = vmatprep.subr.mxu0 0.0
    %197 = vmatpush1.msra.mxu0 %v151
    %198 = vmatprep.subr.mxu0 0.0
    %199 = vmatpush1.msra.mxu0 %v152
    %200 = vmatprep.subr.mxu0 0.0
    %201 = vmatpush1.msra.mxu0 %v153
    %202 = vmatprep.subr.mxu0 0.0
    %203 = vmatpush1.msra.mxu0 %v154
    %204 = vmatprep.subr.mxu0 0.0
    %205 = vmatpush1.msra.mxu0 %v155
    %206 = vmatprep.subr.mxu0 0.0
    %207 = vmatpush1.msra.mxu0 %v156
    %208 = vmatprep.subr.mxu0 0.0
    %209 = vmatpush1.msra.mxu0 %v157
    %210 = vmatprep.subr.mxu0 0.0
    %211 = vmatpush1.msra.mxu0 %v158
    %212 = vmatprep.subr.mxu0 0.0
    %213 = vmatpush1.msra.mxu0 %v159
    %214 = vmatprep.subr.mxu0 0.0
    %215 = vmatpush1.msra.mxu0 %v160
    %216 = vmatprep.subr.mxu0 0.0
    %217 = vmatpush1.msra.mxu0 %v161
    %218 = vmatprep.subr.mxu0 0.0
    %219 = vmatpush1.msra.mxu0 %v162
    %220 = vmatprep.subr.mxu0 0.0
    %221 = vmatpush1.msra.mxu0 %v163
    %222 = vmatprep.subr.mxu0 0.0
    %223 = vmatpush1.msra.mxu0 %v164
    %224 = vmatprep.subr.mxu0 0.0
    %225 = vmatpush1.msra.mxu0 %v165
    %226 = vmatprep.subr.mxu0 0.0
    %227 = vmatpush1.msra.mxu0 %v166
    %228 = vmatprep.subr.mxu0 0.0
    %229 = vmatpush1.msra.mxu0 %v167
    %230 = vmatprep.subr.mxu0 0.0
    %231 = vmatpush1.msra.mxu0 %v168
    %232 = vmatprep.subr.mxu0 0.0
    %233 = vmatpush1.msra.mxu0 %v169
    %234 = vmatprep.subr.mxu0 0.0
    %235 = vmatpush1.msra.mxu0 %v170
    %236 = vmatprep.subr.mxu0 0.0
    %237 = vmatpush1.msra.mxu0 %v171
    %238 = vmatprep.mubr.f32.mxu0 %v173
    %239 = vmatmul.mubr.f32.gmra.mrb[0].mxu0 %v172
    %v240 = vpop.f32.mrb[0].mxu0
    %v241 = vadd.f32 0.0, %v240
    %v242 = vpop.f32.mrb[0].mxu0
    %243 = vdwg.mxu0
    %s244 = scalar_lea.vmem [#allocation2], 1
    %v245 = vld [vmem:[%s244] sm:$0x1]
    %v246 = vlaneseq
    %v247 = vshrl.u32 %v246, 7
    %v248 = vsub.s32 0, %v247
    %v249 = vrot.slane %v245, %v248
    %vm250 = vcmp.eq.s32.totalorder %v40, %v249
    %vm251 = vcmp.eq.s32.totalorder %v41, %v249
    %vm252 = vcmp.eq.s32.totalorder %v42, %v249
    %vm253 = vcmp.eq.s32.totalorder %v43, %v249
    %vm254 = vcmp.eq.s32.totalorder %v44, %v249
    %vm255 = vcmp.eq.s32.totalorder %v45, %v249
    %vm256 = vcmp.eq.s32.totalorder %v46, %v249
    %vm257 = vcmp.eq.s32.totalorder %v47, %v249
    %vm258 = vcmp.eq.s32.totalorder %v48, %v249
    %vm259 = vcmp.eq.s32.totalorder %v49, %v249
    %vm260 = vcmp.eq.s32.totalorder %v50, %v249
    %vm261 = vcmp.eq.s32.totalorder %v51, %v249
    %vm262 = vcmp.eq.s32.totalorder %v52, %v249
    %vm263 = vcmp.eq.s32.totalorder %v53, %v249
    %vm264 = vcmp.eq.s32.totalorder %v54, %v249
    %vm265 = vcmp.eq.s32.totalorder %v55, %v249
    %vm266 = vcmp.eq.s32.totalorder %v56, %v249
    %vm267 = vcmp.eq.s32.totalorder %v57, %v249
    %vm268 = vcmp.eq.s32.totalorder %v58, %v249
    %vm269 = vcmp.eq.s32.totalorder %v59, %v249
    %vm270 = vcmp.eq.s32.totalorder %v60, %v249
    %vm271 = vcmp.eq.s32.totalorder %v61, %v249
    %vm272 = vcmp.eq.s32.totalorder %v62, %v249
    %vm273 = vcmp.eq.s32.totalorder %v63, %v249
    %vm274 = vcmp.eq.s32.totalorder %v64, %v249
    %vm275 = vcmp.eq.s32.totalorder %v65, %v249
    %vm276 = vcmp.eq.s32.totalorder %v66, %v249
    %vm277 = vcmp.eq.s32.totalorder %v67, %v249
    %vm278 = vcmp.eq.s32.totalorder %v68, %v249
    %vm279 = vcmp.eq.s32.totalorder %v69, %v249
    %vm280 = vcmp.eq.s32.totalorder %v70, %v249
    %vm281 = vcmp.eq.s32.totalorder %v71, %v249
    %v282 = vsel %vm250, 1, 0
    %v283 = vsel %vm251, 1, 0
    %v284 = vsel %vm252, 1, 0
    %v285 = vsel %vm253, 1, 0
    %v286 = vsel %vm254, 1, 0
    %v287 = vsel %vm255, 1, 0
    %v288 = vsel %vm256, 1, 0
    %v289 = vsel %vm257, 1, 0
    %v290 = vsel %vm258, 1, 0
    %v291 = vsel %vm259, 1, 0
    %v292 = vsel %vm260, 1, 0
    %v293 = vsel %vm261, 1, 0
    %v294 = vsel %vm262, 1, 0
    %v295 = vsel %vm263, 1, 0
    %v296 = vsel %vm264, 1, 0
    %v297 = vsel %vm265, 1, 0
    %v298 = vsel %vm266, 1, 0
    %v299 = vsel %vm267, 1, 0
    %v300 = vsel %vm268, 1, 0
    %v301 = vsel %vm269, 1, 0
    %v302 = vsel %vm270, 1, 0
    %v303 = vsel %vm271, 1, 0
    %v304 = vsel %vm272, 1, 0
    %v305 = vsel %vm273, 1, 0
    %v306 = vsel %vm274, 1, 0
    %v307 = vsel %vm275, 1, 0
    %v308 = vsel %vm276, 1, 0
    %v309 = vsel %vm277, 1, 0
    %v310 = vsel %vm278, 1, 0
    %v311 = vsel %vm279, 1, 0
    %v312 = vsel %vm280, 1, 0
    %v313 = vsel %vm281, 1, 0
    %v314 = vcvt.s32.f32 %v282
    %v315 = vcvt.s32.f32 %v283
    %v316 = vcvt.s32.f32 %v284
    %v317 = vcvt.s32.f32 %v285
    %v318 = vcvt.s32.f32 %v286
    %v319 = vcvt.s32.f32 %v287
    %v320 = vcvt.s32.f32 %v288
    %v321 = vcvt.s32.f32 %v289
    %v322 = vcvt.s32.f32 %v290
    %v323 = vcvt.s32.f32 %v291
    %v324 = vcvt.s32.f32 %v292
    %v325 = vcvt.s32.f32 %v293
    %v326 = vcvt.s32.f32 %v294
    %v327 = vcvt.s32.f32 %v295
    %v328 = vcvt.s32.f32 %v296
    %v329 = vcvt.s32.f32 %v297
    %v330 = vcvt.s32.f32 %v298
    %v331 = vcvt.s32.f32 %v299
    %v332 = vcvt.s32.f32 %v300
    %v333 = vcvt.s32.f32 %v301
    %v334 = vcvt.s32.f32 %v302
    %v335 = vcvt.s32.f32 %v303
    %v336 = vcvt.s32.f32 %v304
    %v337 = vcvt.s32.f32 %v305
    %v338 = vcvt.s32.f32 %v306
    %v339 = vcvt.s32.f32 %v307
    %v340 = vcvt.s32.f32 %v308
    %v341 = vcvt.s32.f32 %v309
    %v342 = vcvt.s32.f32 %v310
    %v343 = vcvt.s32.f32 %v311
    %v344 = vcvt.s32.f32 %v312
    %v345 = vcvt.s32.f32 %v313
    %346 = vmatprep.subr.mxu0 0.0
    %347 = vmatpush1.msra.mxu0 %v314
    %348 = vmatprep.subr.mxu0 0.0
    %349 = vmatpush1.msra.mxu0 %v315
    %350 = vmatprep.subr.mxu0 0.0
    %351 = vmatpush1.msra.mxu0 %v316
    %352 = vmatprep.subr.mxu0 0.0
    %353 = vmatpush1.msra.mxu0 %v317
    %354 = vmatprep.subr.mxu0 0.0
    %355 = vmatpush1.msra.mxu0 %v318
    %356 = vmatprep.subr.mxu0 0.0
    %357 = vmatpush1.msra.mxu0 %v319
    %358 = vmatprep.subr.mxu0 0.0
    %359 = vmatpush1.msra.mxu0 %v320
    %360 = vmatprep.subr.mxu0 0.0
    %361 = vmatpush1.msra.mxu0 %v321
    %362 = vmatprep.subr.mxu0 0.0
    %363 = vmatpush1.msra.mxu0 %v322
    %364 = vmatprep.subr.mxu0 0.0
    %365 = vmatpush1.msra.mxu0 %v323
    %366 = vmatprep.subr.mxu0 0.0
    %367 = vmatpush1.msra.mxu0 %v324
    %368 = vmatprep.subr.mxu0 0.0
    %369 = vmatpush1.msra.mxu0 %v325
    %370 = vmatprep.subr.mxu0 0.0
    %371 = vmatpush1.msra.mxu0 %v326
    %372 = vmatprep.subr.mxu0 0.0
    %373 = vmatpush1.msra.mxu0 %v327
    %374 = vmatprep.subr.mxu0 0.0
    %375 = vmatpush1.msra.mxu0 %v328
    %376 = vmatprep.subr.mxu0 0.0
    %377 = vmatpush1.msra.mxu0 %v329
    %378 = vmatprep.subr.mxu0 0.0
    %379 = vmatpush1.msra.mxu0 %v330
    %380 = vmatprep.subr.mxu0 0.0
    %381 = vmatpush1.msra.mxu0 %v331
    %382 = vmatprep.subr.mxu0 0.0
    %383 = vmatpush1.msra.mxu0 %v332
    %384 = vmatprep.subr.mxu0 0.0
    %385 = vmatpush1.msra.mxu0 %v333
    %386 = vmatprep.subr.mxu0 0.0
    %387 = vmatpush1.msra.mxu0 %v334
    %388 = vmatprep.subr.mxu0 0.0
    %389 = vmatpush1.msra.mxu0 %v335
    %390 = vmatprep.subr.mxu0 0.0
    %391 = vmatpush1.msra.mxu0 %v336
    %392 = vmatprep.subr.mxu0 0.0
    %393 = vmatpush1.msra.mxu0 %v337
    %394 = vmatprep.subr.mxu0 0.0
    %395 = vmatpush1.msra.mxu0 %v338
    %396 = vmatprep.subr.mxu0 0.0
    %397 = vmatpush1.msra.mxu0 %v339
    %398 = vmatprep.subr.mxu0 0.0
    %399 = vmatpush1.msra.mxu0 %v340
    %400 = vmatprep.subr.mxu0 0.0
    %401 = vmatpush1.msra.mxu0 %v341
    %402 = vmatprep.subr.mxu0 0.0
    %403 = vmatpush1.msra.mxu0 %v342
    %404 = vmatprep.subr.mxu0 0.0
    %405 = vmatpush1.msra.mxu0 %v343
    %406 = vmatprep.subr.mxu0 0.0
    %407 = vmatpush1.msra.mxu0 %v344
    %408 = vmatprep.subr.mxu0 0.0
    %409 = vmatpush1.msra.mxu0 %v345
    %410 = vmatprep.mubr.f32.mxu0 %v173
    %411 = vmatmul.mubr.f32.gmra.mrb[0].mxu0 %v172
    %v412 = vpop.f32.mrb[0].mxu0
    %v413 = vadd.f32 0.0, %v412
    %v414 = vpop.f32.mrb[0].mxu0
    %415 = vdwg.mxu0
    %v416 = vmax.f32 %v241, %v413
    %s417 = scalar_lea.vmem [#allocation2], 2
    %v418 = vld [vmem:[%s417] sm:$0x1]
    %v419 = vlaneseq
    %v420 = vshrl.u32 %v419, 7
    %v421 = vsub.s32 0, %v420
    %v422 = vrot.slane %v418, %v421
    %vm423 = vcmp.eq.s32.totalorder %v40, %v422
    %vm424 = vcmp.eq.s32.totalorder %v41, %v422
    %vm425 = vcmp.eq.s32.totalorder %v42, %v422
    %vm426 = vcmp.eq.s32.totalorder %v43, %v422
    %vm427 = vcmp.eq.s32.totalorder %v44, %v422
    %vm428 = vcmp.eq.s32.totalorder %v45, %v422
    %vm429 = vcmp.eq.s32.totalorder %v46, %v422
    %vm430 = vcmp.eq.s32.totalorder %v47, %v422
    %vm431 = vcmp.eq.s32.totalorder %v48, %v422
    %vm432 = vcmp.eq.s32.totalorder %v49, %v422
    %vm433 = vcmp.eq.s32.totalorder %v50, %v422
    %vm434 = vcmp.eq.s32.totalorder %v51, %v422
    %vm435 = vcmp.eq.s32.totalorder %v52, %v422
    %vm436 = vcmp.eq.s32.totalorder %v53, %v422
    %vm437 = vcmp.eq.s32.totalorder %v54, %v422
    %vm438 = vcmp.eq.s32.totalorder %v55, %v422
    %vm439 = vcmp.eq.s32.totalorder %v56, %v422
    %vm440 = vcmp.eq.s32.totalorder %v57, %v422
    %vm441 = vcmp.eq.s32.totalorder %v58, %v422
    %vm442 = vcmp.eq.s32.totalorder %v59, %v422
    %vm443 = vcmp.eq.s32.totalorder %v60, %v422
    %vm444 = vcmp.eq.s32.totalorder %v61, %v422
    %vm445 = vcmp.eq.s32.totalorder %v62, %v422
    %vm446 = vcmp.eq.s32.totalorder %v63, %v422
    %vm447 = vcmp.eq.s32.totalorder %v64, %v422
    %vm448 = vcmp.eq.s32.totalorder %v65, %v422
    %vm449 = vcmp.eq.s32.totalorder %v66, %v422
    %vm450 = vcmp.eq.s32.totalorder %v67, %v422
    %vm451 = vcmp.eq.s32.totalorder %v68, %v422
    %vm452 = vcmp.eq.s32.totalorder %v69, %v422
    %vm453 = vcmp.eq.s32.totalorder %v70, %v422
    %vm454 = vcmp.eq.s32.totalorder %v71, %v422
    %v455 = vsel %vm423, 1, 0
    %v456 = vsel %vm424, 1, 0
    %v457 = vsel %vm425, 1, 0
    %v458 = vsel %vm426, 1, 0
    %v459 = vsel %vm427, 1, 0
    %v460 = vsel %vm428, 1, 0
    %v461 = vsel %vm429, 1, 0
    %v462 = vsel %vm430, 1, 0
    %v463 = vsel %vm431, 1, 0
    %v464 = vsel %vm432, 1, 0
    %v465 = vsel %vm433, 1, 0
    %v466 = vsel %vm434, 1, 0
    %v467 = vsel %vm435, 1, 0
    %v468 = vsel %vm436, 1, 0
    %v469 = vsel %vm437, 1, 0
    %v470 = vsel %vm438, 1, 0
    %v471 = vsel %vm439, 1, 0
    %v472 = vsel %vm440, 1, 0
    %v473 = vsel %vm441, 1, 0
    %v474 = vsel %vm442, 1, 0
    %v475 = vsel %vm443, 1, 0
    %v476 = vsel %vm444, 1, 0
    %v477 = vsel %vm445, 1, 0
    %v478 = vsel %vm446, 1, 0
    %v479 = vsel %vm447, 1, 0
    %v480 = vsel %vm448, 1, 0
    %v481 = vsel %vm449, 1, 0
    %v482 = vsel %vm450, 1, 0
    %v483 = vsel %vm451, 1, 0
    %v484 = vsel %vm452, 1, 0
    %v485 = vsel %vm453, 1, 0
    %v486 = vsel %vm454, 1, 0
    %v487 = vcvt.s32.f32 %v455
    %v488 = vcvt.s32.f32 %v456
    %v489 = vcvt.s32.f32 %v457
    %v490 = vcvt.s32.f32 %v458
    %v491 = vcvt.s32.f32 %v459
    %v492 = vcvt.s32.f32 %v460
    %v493 = vcvt.s32.f32 %v461
    %v494 = vcvt.s32.f32 %v462
    %v495 = vcvt.s32.f32 %v463
    %v496 = vcvt.s32.f32 %v464
    %v497 = vcvt.s32.f32 %v465
    %v498 = vcvt.s32.f32 %v466
    %v499 = vcvt.s32.f32 %v467
    %v500 = vcvt.s32.f32 %v468
    %v501 = vcvt.s32.f32 %v469
    %v502 = vcvt.s32.f32 %v470
    %v503 = vcvt.s32.f32 %v471
    %v504 = vcvt.s32.f32 %v472
    %v505 = vcvt.s32.f32 %v473
    %v506 = vcvt.s32.f32 %v474
    %v507 = vcvt.s32.f32 %v475
    %v508 = vcvt.s32.f32 %v476
    %v509 = vcvt.s32.f32 %v477
    %v510 = vcvt.s32.f32 %v478
    %v511 = vcvt.s32.f32 %v479
    %v512 = vcvt.s32.f32 %v480
    %v513 = vcvt.s32.f32 %v481
    %v514 = vcvt.s32.f32 %v482
    %v515 = vcvt.s32.f32 %v483
    %v516 = vcvt.s32.f32 %v484
    %v517 = vcvt.s32.f32 %v485
    %v518 = vcvt.s32.f32 %v486
    %519 = vmatprep.subr.mxu0 0.0
    %520 = vmatpush1.msra.mxu0 %v487
    %521 = vmatprep.subr.mxu0 0.0
    %522 = vmatpush1.msra.mxu0 %v488
    %523 = vmatprep.subr.mxu0 0.0
    %524 = vmatpush1.msra.mxu0 %v489
    %525 = vmatprep.subr.mxu0 0.0
    %526 = vmatpush1.msra.mxu0 %v490
    %527 = vmatprep.subr.mxu0 0.0
    %528 = vmatpush1.msra.mxu0 %v491
    %529 = vmatprep.subr.mxu0 0.0
    %530 = vmatpush1.msra.mxu0 %v492
    %531 = vmatprep.subr.mxu0 0.0
    %532 = vmatpush1.msra.mxu0 %v493
    %533 = vmatprep.subr.mxu0 0.0
    %534 = vmatpush1.msra.mxu0 %v494
    %535 = vmatprep.subr.mxu0 0.0
    %536 = vmatpush1.msra.mxu0 %v495
    %537 = vmatprep.subr.mxu0 0.0
    %538 = vmatpush1.msra.mxu0 %v496
    %539 = vmatprep.subr.mxu0 0.0
    %540 = vmatpush1.msra.mxu0 %v497
    %541 = vmatprep.subr.mxu0 0.0
    %542 = vmatpush1.msra.mxu0 %v498
    %543 = vmatprep.subr.mxu0 0.0
    %544 = vmatpush1.msra.mxu0 %v499
    %545 = vmatprep.subr.mxu0 0.0
    %546 = vmatpush1.msra.mxu0 %v500
    %547 = vmatprep.subr.mxu0 0.0
    %548 = vmatpush1.msra.mxu0 %v501
    %549 = vmatprep.subr.mxu0 0.0
    %550 = vmatpush1.msra.mxu0 %v502
    %551 = vmatprep.subr.mxu0 0.0
    %552 = vmatpush1.msra.mxu0 %v503
    %553 = vmatprep.subr.mxu0 0.0
    %554 = vmatpush1.msra.mxu0 %v504
    %555 = vmatprep.subr.mxu0 0.0
    %556 = vmatpush1.msra.mxu0 %v505
    %557 = vmatprep.subr.mxu0 0.0
    %558 = vmatpush1.msra.mxu0 %v506
    %559 = vmatprep.subr.mxu0 0.0
    %560 = vmatpush1.msra.mxu0 %v507
    %561 = vmatprep.subr.mxu0 0.0
    %562 = vmatpush1.msra.mxu0 %v508
    %563 = vmatprep.subr.mxu0 0.0
    %564 = vmatpush1.msra.mxu0 %v509
    %565 = vmatprep.subr.mxu0 0.0
    %566 = vmatpush1.msra.mxu0 %v510
    %567 = vmatprep.subr.mxu0 0.0
    %568 = vmatpush1.msra.mxu0 %v511
    %569 = vmatprep.subr.mxu0 0.0
    %570 = vmatpush1.msra.mxu0 %v512
    %571 = vmatprep.subr.mxu0 0.0
    %572 = vmatpush1.msra.mxu0 %v513
    %573 = vmatprep.subr.mxu0 0.0
    %574 = vmatpush1.msra.mxu0 %v514
    %575 = vmatprep.subr.mxu0 0.0
    %576 = vmatpush1.msra.mxu0 %v515
    %577 = vmatprep.subr.mxu0 0.0
    %578 = vmatpush1.msra.mxu0 %v516
    %579 = vmatprep.subr.mxu0 0.0
    %580 = vmatpush1.msra.mxu0 %v517
    %581 = vmatprep.subr.mxu0 0.0
    %582 = vmatpush1.msra.mxu0 %v518
    %583 = vmatprep.mubr.f32.mxu0 %v173
    %584 = vmatmul.mubr.f32.gmra.mrb[0].mxu0 %v172
    %v585 = vpop.f32.mrb[0].mxu0
    %v586 = vadd.f32 0.0, %v585
    %v587 = vpop.f32.mrb[0].mxu0
    %588 = vdwg.mxu0
    %v589 = vmax.f32 %v416, %v586
    %s590 = scalar_lea.vmem [#allocation2], 3
    %v591 = vld [vmem:[%s590] sm:$0x1]
    %v592 = vlaneseq
    %v593 = vshrl.u32 %v592, 7
    %v594 = vsub.s32 0, %v593
    %v595 = vrot.slane %v591, %v594
    %vm596 = vcmp.eq.s32.totalorder %v40, %v595
    %vm597 = vcmp.eq.s32.totalorder %v41, %v595
    %vm598 = vcmp.eq.s32.totalorder %v42, %v595
    %vm599 = vcmp.eq.s32.totalorder %v43, %v595
    %vm600 = vcmp.eq.s32.totalorder %v44, %v595
    %vm601 = vcmp.eq.s32.totalorder %v45, %v595
    %vm602 = vcmp.eq.s32.totalorder %v46, %v595
    %vm603 = vcmp.eq.s32.totalorder %v47, %v595
    %vm604 = vcmp.eq.s32.totalorder %v48, %v595
    %vm605 = vcmp.eq.s32.totalorder %v49, %v595
    %vm606 = vcmp.eq.s32.totalorder %v50, %v595
    %vm607 = vcmp.eq.s32.totalorder %v51, %v595
    %vm608 = vcmp.eq.s32.totalorder %v52, %v595
    %vm609 = vcmp.eq.s32.totalorder %v53, %v595
    %vm610 = vcmp.eq.s32.totalorder %v54, %v595
    %vm611 = vcmp.eq.s32.totalorder %v55, %v595
    %vm612 = vcmp.eq.s32.totalorder %v56, %v595
    %vm613 = vcmp.eq.s32.totalorder %v57, %v595
    %vm614 = vcmp.eq.s32.totalorder %v58, %v595
    %vm615 = vcmp.eq.s32.totalorder %v59, %v595
    %vm616 = vcmp.eq.s32.totalorder %v60, %v595
    %vm617 = vcmp.eq.s32.totalorder %v61, %v595
    %vm618 = vcmp.eq.s32.totalorder %v62, %v595
    %vm619 = vcmp.eq.s32.totalorder %v63, %v595
    %vm620 = vcmp.eq.s32.totalorder %v64, %v595
    %vm621 = vcmp.eq.s32.totalorder %v65, %v595
    %vm622 = vcmp.eq.s32.totalorder %v66, %v595
    %vm623 = vcmp.eq.s32.totalorder %v67, %v595
    %vm624 = vcmp.eq.s32.totalorder %v68, %v595
    %vm625 = vcmp.eq.s32.totalorder %v69, %v595
    %vm626 = vcmp.eq.s32.totalorder %v70, %v595
    %vm627 = vcmp.eq.s32.totalorder %v71, %v595
    %v628 = vsel %vm596, 1, 0
    %v629 = vsel %vm597, 1, 0
    %v630 = vsel %vm598, 1, 0
    %v631 = vsel %vm599, 1, 0
    %v632 = vsel %vm600, 1, 0
    %v633 = vsel %vm601, 1, 0
    %v634 = vsel %vm602, 1, 0
    %v635 = vsel %vm603, 1, 0
    %v636 = vsel %vm604, 1, 0
    %v637 = vsel %vm605, 1, 0
    %v638 = vsel %vm606, 1, 0
    %v639 = vsel %vm607, 1, 0
    %v640 = vsel %vm608, 1, 0
    %v641 = vsel %vm609, 1, 0
    %v642 = vsel %vm610, 1, 0
    %v643 = vsel %vm611, 1, 0
    %v644 = vsel %vm612, 1, 0
    %v645 = vsel %vm613, 1, 0
    %v646 = vsel %vm614, 1, 0
    %v647 = vsel %vm615, 1, 0
    %v648 = vsel %vm616, 1, 0
    %v649 = vsel %vm617, 1, 0
    %v650 = vsel %vm618, 1, 0
    %v651 = vsel %vm619, 1, 0
    %v652 = vsel %vm620, 1, 0
    %v653 = vsel %vm621, 1, 0
    %v654 = vsel %vm622, 1, 0
    %v655 = vsel %vm623, 1, 0
    %v656 = vsel %vm624, 1, 0
    %v657 = vsel %vm625, 1, 0
    %v658 = vsel %vm626, 1, 0
    %v659 = vsel %vm627, 1, 0
    %v660 = vcvt.s32.f32 %v628
    %v661 = vcvt.s32.f32 %v629
    %v662 = vcvt.s32.f32 %v630
    %v663 = vcvt.s32.f32 %v631
    %v664 = vcvt.s32.f32 %v632
    %v665 = vcvt.s32.f32 %v633
    %v666 = vcvt.s32.f32 %v634
    %v667 = vcvt.s32.f32 %v635
    %v668 = vcvt.s32.f32 %v636
    %v669 = vcvt.s32.f32 %v637
    %v670 = vcvt.s32.f32 %v638
    %v671 = vcvt.s32.f32 %v639
    %v672 = vcvt.s32.f32 %v640
    %v673 = vcvt.s32.f32 %v641
    %v674 = vcvt.s32.f32 %v642
    %v675 = vcvt.s32.f32 %v643
    %v676 = vcvt.s32.f32 %v644
    %v677 = vcvt.s32.f32 %v645
    %v678 = vcvt.s32.f32 %v646
    %v679 = vcvt.s32.f32 %v647
    %v680 = vcvt.s32.f32 %v648
    %v681 = vcvt.s32.f32 %v649
    %v682 = vcvt.s32.f32 %v650
    %v683 = vcvt.s32.f32 %v651
    %v684 = vcvt.s32.f32 %v652
    %v685 = vcvt.s32.f32 %v653
    %v686 = vcvt.s32.f32 %v654
    %v687 = vcvt.s32.f32 %v655
    %v688 = vcvt.s32.f32 %v656
    %v689 = vcvt.s32.f32 %v657
    %v690 = vcvt.s32.f32 %v658
    %v691 = vcvt.s32.f32 %v659
    %692 = vmatprep.subr.mxu0 0.0
    %693 = vmatpush1.msra.mxu0 %v660
    %694 = vmatprep.subr.mxu0 0.0
    %695 = vmatpush1.msra.mxu0 %v661
    %696 = vmatprep.subr.mxu0 0.0
    %697 = vmatpush1.msra.mxu0 %v662
    %698 = vmatprep.subr.mxu0 0.0
    %699 = vmatpush1.msra.mxu0 %v663
    %700 = vmatprep.subr.mxu0 0.0
    %701 = vmatpush1.msra.mxu0 %v664
    %702 = vmatprep.subr.mxu0 0.0
    %703 = vmatpush1.msra.mxu0 %v665
    %704 = vmatprep.subr.mxu0 0.0
    %705 = vmatpush1.msra.mxu0 %v666
    %706 = vmatprep.subr.mxu0 0.0
    %707 = vmatpush1.msra.mxu0 %v667
    %708 = vmatprep.subr.mxu0 0.0
    %709 = vmatpush1.msra.mxu0 %v668
    %710 = vmatprep.subr.mxu0 0.0
    %711 = vmatpush1.msra.mxu0 %v669
    %712 = vmatprep.subr.mxu0 0.0
    %713 = vmatpush1.msra.mxu0 %v670
    %714 = vmatprep.subr.mxu0 0.0
    %715 = vmatpush1.msra.mxu0 %v671
    %716 = vmatprep.subr.mxu0 0.0
    %717 = vmatpush1.msra.mxu0 %v672
    %718 = vmatprep.subr.mxu0 0.0
    %719 = vmatpush1.msra.mxu0 %v673
    %720 = vmatprep.subr.mxu0 0.0
    %721 = vmatpush1.msra.mxu0 %v674
    %722 = vmatprep.subr.mxu0 0.0
    %723 = vmatpush1.msra.mxu0 %v675
    %724 = vmatprep.subr.mxu0 0.0
    %725 = vmatpush1.msra.mxu0 %v676
    %726 = vmatprep.subr.mxu0 0.0
    %727 = vmatpush1.msra.mxu0 %v677
    %728 = vmatprep.subr.mxu0 0.0
    %729 = vmatpush1.msra.mxu0 %v678
    %730 = vmatprep.subr.mxu0 0.0
    %731 = vmatpush1.msra.mxu0 %v679
    %732 = vmatprep.subr.mxu0 0.0
    %733 = vmatpush1.msra.mxu0 %v680
    %734 = vmatprep.subr.mxu0 0.0
    %735 = vmatpush1.msra.mxu0 %v681
    %736 = vmatprep.subr.mxu0 0.0
    %737 = vmatpush1.msra.mxu0 %v682
    %738 = vmatprep.subr.mxu0 0.0
    %739 = vmatpush1.msra.mxu0 %v683
    %740 = vmatprep.subr.mxu0 0.0
    %741 = vmatpush1.msra.mxu0 %v684
    %742 = vmatprep.subr.mxu0 0.0
    %743 = vmatpush1.msra.mxu0 %v685
    %744 = vmatprep.subr.mxu0 0.0
    %745 = vmatpush1.msra.mxu0 %v686
    %746 = vmatprep.subr.mxu0 0.0
    %747 = vmatpush1.msra.mxu0 %v687
    %748 = vmatprep.subr.mxu0 0.0
    %749 = vmatpush1.msra.mxu0 %v688
    %750 = vmatprep.subr.mxu0 0.0
    %751 = vmatpush1.msra.mxu0 %v689
    %752 = vmatprep.subr.mxu0 0.0
    %753 = vmatpush1.msra.mxu0 %v690
    %754 = vmatprep.subr.mxu0 0.0
    %755 = vmatpush1.msra.mxu0 %v691
    %756 = vmatprep.mubr.f32.mxu0 %v173
    %757 = vmatmul.mubr.f32.gmra.mrb[0].mxu0 %v172
    %v758 = vpop.f32.mrb[0].mxu0
    %v759 = vadd.f32 0.0, %v758
    %v760 = vpop.f32.mrb[0].mxu0
    %761 = vdwg.mxu0
    %v762 = vmax.f32 %v589, %v759
    %763 = vst [vmem:[#allocation7] sm:$0xff] %v762
    // Predicated region
    $region18: #{tpu_custom_call.1} parent=1 // pred_check
      _
    $region19: #{tpu_custom_call.1} parent=1 // pred_check_branch
      %765 = sbr.rel (0) target = $region21
    $region20: #{tpu_custom_call.1} parent=1 // pred_region
      %s767 = ssub.s32 128, 128
      %768 = vsyncadd [#allocation4], %s767
      %s770 = sshll.u32 [#allocation7], 4
      %s771 = int_to_ptr.vmem [resolvable:$true] %s770
      %773 = dma.vmem_to_hbm [thread:$0]  %s771, 128, %s2, [#allocation4]
    $region21: #{tpu_custom_call.1} parent=1 // pred_fallthru
      _
    // Predicated region
    $region22: #{tpu_custom_call.1} parent=1 // pred_check
      _
    $region23: #{tpu_custom_call.1} parent=1 // pred_check_branch
      %775 = sbr.rel (0) target = $region25
    $region24: #{tpu_custom_call.1} parent=1 // pred_region
      %776 = dma.done [#allocation4], 128
    $region25: #{tpu_custom_call.1} parent=1 // pred_fallthru
      _
    %777 = vsyncpa [#allocation3], 1
    %778 = vsyncpa [#allocation6], 1
    %779 = vsyncpa [#allocation4], 1

</llo_original>
